<compile_context>
chip_gen: v7x
topology: tpu7x:2x2x1
jax: 0.10.0
libtpu: 0.0.40
codegen_flags: <defaults>
</compile_context>

<pallas_src>
import functools

import jax
import jax.numpy as jnp
from jax.experimental import pallas as pl
from jax.experimental.pallas import tpu as pltpu

_LANE = 128


def _round_up(n, m):
    return ((n + m - 1) // m) * m


@functools.lru_cache(maxsize=1)
def _has_two_tensorcores():
    """True on chips whose single JAX device spans 2 TensorCores (v4/v5p/v7x)."""
    try:
        kind = jax.devices()[0].device_kind.lower()
    except Exception:
        return False
    return any(t in kind for t in ("v4", "v5p", "v7"))


def _dqn_kernel(x_ref, w1_ref, b1_ref, w2_ref, b2_ref, w3_ref, b3_ref, o_ref):
    """relu(x@W1+b1) -> relu(.@W2+b2) -> .@W3+b3, stored at true n_actions width."""
    # In-kernel cast of x to the weight dtype (bf16 fast path); costs nothing,
    # avoids a separate XLA cast op + HBM round-trip in the wrapper.
    x = x_ref[...].astype(w1_ref.dtype)
    h1 = jnp.dot(x, w1_ref[...], preferred_element_type=jnp.float32) + b1_ref[...]
    h1 = jnp.maximum(h1, 0.0)
    h2 = (
        jnp.dot(h1.astype(w2_ref.dtype), w2_ref[...], preferred_element_type=jnp.float32)
        + b2_ref[...]
    )
    h2 = jnp.maximum(h2, 0.0)
    # W3 columns are zero-padded to 128 lanes (free MXU filler); slice back to
    # the real action count before the (masked) store so HBM writeback is tiny.
    q = jnp.dot(h2.astype(w3_ref.dtype), w3_ref[...], preferred_element_type=jnp.float32)
    n_act = o_ref.shape[-1]
    o_ref[...] = (q[:, :n_act] + b3_ref[...]).astype(o_ref.dtype)


def prepare_params(params, *, use_bf16=True):
    """One-time packing of PyTorch-layout DQN params for dqn_forward.

    params: (w1 [h, n_obs], b1 [h], w2 [h, h], b2 [h], w3 [n_act, h], b3 [n_act])
    Returns (w1 [n_obs, h], b1 [1, h], w2 [h, h], b2 [1, h],
             w3 [h, round_up(n_act,128)] zero-padded, b3 [1, n_act])
    with weights in bf16 (or f32) and biases in f32.  Call once, outside the
    per-step forward path.
    """
    w1, b1, w2, b2, w3, b3 = params
    cd = jnp.bfloat16 if use_bf16 else jnp.float32
    hidden = w1.shape[0]
    n_act = w3.shape[0]
    n_act_p = _round_up(n_act, _LANE)

    w3_p = jnp.zeros((hidden, n_act_p), jnp.float32).at[:, :n_act].set(w3.T)
    return (
        w1.T.astype(cd),
        b1.reshape(1, -1).astype(jnp.float32),
        w2.T.astype(cd),
        b2.reshape(1, -1).astype(jnp.float32),
        w3_p.astype(cd),
        b3.reshape(1, -1).astype(jnp.float32),
    )


@functools.partial(jax.jit, static_argnames=("block_b",))
def dqn_forward(x, packed_params, *, block_b=1024):
    """x: [B, n_observations] float32 -> Q-values [B, n_actions] float32."""
    w1, b1, w2, b2, w3p, b3 = packed_params
    B, n_obs = x.shape
    hidden = w1.shape[1]
    n_act_p = w3p.shape[1]
    n_act = b3.shape[1]
    wsize = jnp.dtype(w1.dtype).itemsize

    # Batch tile: multiple of 16 for bf16 activations (clean sublane packing
    # for the f32->bf16 casts of h1/h2), 8 otherwise.  Only force >= 2 grid
    # steps on 2-TensorCore chips; on single-TC chips one big tile is best.
    mult = 16 if w1.dtype == jnp.bfloat16 else 8
    b_pad = _round_up(B, mult)
    blk = min(block_b, b_pad)
    if _has_two_tensorcores():
        blk = min(blk, _round_up(pl.cdiv(b_pad, 2), mult))
    blk = max(mult, _round_up(blk, mult))
    grid = (pl.cdiv(B, blk),)

    weight_elems = n_obs * hidden + hidden * hidden + hidden * n_act_p
    cost = pl.CostEstimate(
        flops=2 * B * weight_elems,
        transcendentals=0,
        bytes_accessed=(
            B * n_obs * 4                    # x (f32 in)
            + weight_elems * wsize           # resident weights
            + (2 * hidden + n_act) * 4       # biases (f32)
            + B * n_act * 4                  # true-width output
        ),
    )

    full = lambda shape: pl.BlockSpec(shape, lambda i: (0, 0))

    return pl.pallas_call(
        _dqn_kernel,
        out_shape=jax.ShapeDtypeStruct((B, n_act), jnp.float32),
        grid_spec=pltpu.PrefetchScalarGridSpec(
            num_scalar_prefetch=0,
            grid=grid,
            in_specs=[
                pl.BlockSpec((blk, n_obs), lambda i: (i, 0)),  # x batch tile
                full((n_obs, hidden)),                          # W1 (resident)
                full((1, hidden)),                              # b1
                full((hidden, hidden)),                         # W2
                full((1, hidden)),                              # b2
                full((hidden, n_act_p)),                        # W3 (lane-padded)
                full((1, n_act)),                               # b3 (true width)
            ],
            out_specs=pl.BlockSpec((blk, n_act), lambda i: (i, 0)),
        ),
        compiler_params=pltpu.CompilerParams(dimension_semantics=("parallel",)),
        cost_estimate=cost,
    )(x, w1, b1, w2, b2, w3p, b3)


def init_dqn_params(key, n_observations, n_actions, hidden=128):
    """PyTorch nn.Linear-style init (U(-k, k), k=1/sqrt(fan_in)); PyTorch [out, in] layout."""
    ks = jax.random.split(key, 6)

    def linear(kw, kb, fan_in, fan_out):
        bound = 1.0 / float(fan_in) ** 0.5
        w = jax.random.uniform(kw, (fan_out, fan_in), jnp.float32, -bound, bound)
        b = jax.random.uniform(kb, (fan_out,), jnp.float32, -bound, bound)
        return w, b

    w1, b1 = linear(ks[0], ks[1], n_observations, hidden)
    w2, b2 = linear(ks[2], ks[3], hidden, hidden)
    w3, b3 = linear(ks[4], ks[5], hidden, n_actions)
    return (w1, b1, w2, b2, w3, b3)


def dqn_forward_ref(x, packed_params):
    """Pure-JAX reference with identical mixed-precision casts on the packed params."""
    w1, b1, w2, b2, w3p, b3 = packed_params
    cd = w1.dtype
    h1 = jnp.maximum(
        jnp.dot(x.astype(cd), w1, preferred_element_type=jnp.float32) + b1, 0.0
    )
    h2 = jnp.maximum(
        jnp.dot(h1.astype(cd), w2, preferred_element_type=jnp.float32) + b2, 0.0
    )
    q = jnp.dot(h2.astype(cd), w3p, preferred_element_type=jnp.float32)
    return q[:, : b3.shape[1]] + b3


if __name__ == "__main__":
    key = jax.random.PRNGKey(0)
    k_param, k_x1, k_x2 = jax.random.split(key, 3)

    # Small shapes consistent with a Pong DQN: flat observation vector of
    # length 8, 3 discrete actions (up / down / stay).
    n_observations, n_actions, hidden = 8, 3, 128
    raw_params = init_dqn_params(k_param, n_observations, n_actions, hidden)

    packed_bf16 = prepare_params(raw_params, use_bf16=True)
    packed_f32 = prepare_params(raw_params, use_bf16=False)  # precision escape hatch

    # Case 1: tiny acting-path batch (single grid step, bf16 MXU path).
    x1 = jax.random.normal(k_x1, (8, n_observations), dtype=jnp.float32)
    q1 = jax.block_until_ready(dqn_forward(x1, packed_bf16))
    assert q1.shape == (8, n_actions)
    assert jnp.allclose(q1, dqn_forward_ref(x1, packed_bf16), atol=2e-3, rtol=2e-3)

    # Case 2: batch not a multiple of the tile (partial masked-writeback tile),
    # f32 weights for TD-target-grade precision.
    x2 = jax.random.normal(k_x2, (20, n_observations), dtype=jnp.float32)
    q2 = jax.block_until_ready(dqn_forward(x2, packed_f32))
    assert q2.shape == (20, n_actions)
    assert jnp.allclose(q2, dqn_forward_ref(x2, packed_f32), atol=2e-3, rtol=2e-3)

    print("KERNEL_OK")
</pallas_src>

<mosaic_0001>
module attributes {stable_mosaic.version = 11 : i64} {
  func.func @_dqn_kernel(%arg0: i32, %arg1: memref<16x8xf32, #tpu.memory_space<vmem>>, %arg2: memref<8x128xbf16, #tpu.memory_space<vmem>>, %arg3: memref<1x128xf32, #tpu.memory_space<vmem>>, %arg4: memref<128x128xbf16, #tpu.memory_space<vmem>>, %arg5: memref<1x128xf32, #tpu.memory_space<vmem>>, %arg6: memref<128x128xbf16, #tpu.memory_space<vmem>>, %arg7: memref<1x3xf32, #tpu.memory_space<vmem>>, %arg8: memref<16x3xf32, #tpu.memory_space<vmem>>) attributes {dimension_semantics = [#tpu.dimension_semantics<parallel>], iteration_bounds = array<i64: 1>, scalar_prefetch = 0 : i64, scratch_operands = 0 : i64, tpu.core_type = #tpu.core_type<tc>, window_params = [{transform_indices = @transform_0, window_bounds = array<i64: 16, 8>}, {pipeline_mode = #tpu.pipeline_mode<synchronous>, transform_indices = @transform_1, window_bounds = array<i64: 8, 128>}, {pipeline_mode = #tpu.pipeline_mode<synchronous>, transform_indices = @transform_2, window_bounds = array<i64: 1, 128>}, {pipeline_mode = #tpu.pipeline_mode<synchronous>, transform_indices = @transform_3, window_bounds = array<i64: 128, 128>}, {pipeline_mode = #tpu.pipeline_mode<synchronous>, transform_indices = @transform_4, window_bounds = array<i64: 1, 128>}, {pipeline_mode = #tpu.pipeline_mode<synchronous>, transform_indices = @transform_5, window_bounds = array<i64: 128, 128>}, {pipeline_mode = #tpu.pipeline_mode<synchronous>, transform_indices = @transform_6, window_bounds = array<i64: 1, 3>}, {transform_indices = @transform_7, window_bounds = array<i64: 16, 3>}]} {
    %c0 = arith.constant 0 : index
    %c0_0 = arith.constant 0 : index
    %0 = vector.load %arg1[%c0, %c0_0] : memref<16x8xf32, #tpu.memory_space<vmem>>, vector<16x8xf32>
    %1 = arith.truncf %0 : vector<16x8xf32> to vector<16x8xbf16>
    %c0_1 = arith.constant 0 : index
    %c0_2 = arith.constant 0 : index
    %2 = vector.load %arg2[%c0_1, %c0_2] : memref<8x128xbf16, #tpu.memory_space<vmem>>, vector<8x128xbf16>
    %cst = arith.constant dense<0.000000e+00> : vector<16x128xf32>
    %3 = tpu.matmul %1, %2, %cst {dimension_numbers = #tpu.dot_dimension_numbers<[1], [0], [0], [1], [0, 0, 1, 1], [], []>} : vector<16x8xbf16>, vector<8x128xbf16>, vector<16x128xf32> -> vector<16x128xf32>
    %c0_3 = arith.constant 0 : index
    %c0_4 = arith.constant 0 : index
    %4 = vector.load %arg3[%c0_3, %c0_4] : memref<1x128xf32, #tpu.memory_space<vmem>>, vector<1x128xf32>
    %5 = vector.broadcast %4 : vector<1x128xf32> to vector<16x128xf32>
    %6 = arith.addf %3, %5 : vector<16x128xf32>
    %cst_5 = arith.constant 0.000000e+00 : f32
    %7 = vector.broadcast %cst_5 : f32 to vector<16x128xf32>
    %8 = arith.maximumf %6, %7 : vector<16x128xf32>
    %9 = arith.truncf %8 : vector<16x128xf32> to vector<16x128xbf16>
    %c0_6 = arith.constant 0 : index
    %c0_7 = arith.constant 0 : index
    %10 = vector.load %arg4[%c0_6, %c0_7] : memref<128x128xbf16, #tpu.memory_space<vmem>>, vector<128x128xbf16>
    %cst_8 = arith.constant dense<0.000000e+00> : vector<16x128xf32>
    %11 = tpu.matmul %9, %10, %cst_8 {dimension_numbers = #tpu.dot_dimension_numbers<[1], [0], [0], [1], [0, 0, 1, 1], [], []>} : vector<16x128xbf16>, vector<128x128xbf16>, vector<16x128xf32> -> vector<16x128xf32>
    %c0_9 = arith.constant 0 : index
    %c0_10 = arith.constant 0 : index
    %12 = vector.load %arg5[%c0_9, %c0_10] : memref<1x128xf32, #tpu.memory_space<vmem>>, vector<1x128xf32>
    %13 = vector.broadcast %12 : vector<1x128xf32> to vector<16x128xf32>
    %14 = arith.addf %11, %13 : vector<16x128xf32>
    %cst_11 = arith.constant 0.000000e+00 : f32
    %15 = vector.broadcast %cst_11 : f32 to vector<16x128xf32>
    %16 = arith.maximumf %14, %15 : vector<16x128xf32>
    %17 = arith.truncf %16 : vector<16x128xf32> to vector<16x128xbf16>
    %c0_12 = arith.constant 0 : index
    %c0_13 = arith.constant 0 : index
    %18 = vector.load %arg6[%c0_12, %c0_13] : memref<128x128xbf16, #tpu.memory_space<vmem>>, vector<128x128xbf16>
    %cst_14 = arith.constant dense<0.000000e+00> : vector<16x128xf32>
    %19 = tpu.matmul %17, %18, %cst_14 {dimension_numbers = #tpu.dot_dimension_numbers<[1], [0], [0], [1], [0, 0, 1, 1], [], []>} : vector<16x128xbf16>, vector<128x128xbf16>, vector<16x128xf32> -> vector<16x128xf32>
    %20 = vector.extract_strided_slice %19 {offsets = [0, 0], sizes = [16, 3], strides = [1, 1]} : vector<16x128xf32> to vector<16x3xf32>
    %c0_15 = arith.constant 0 : index
    %c0_16 = arith.constant 0 : index
    %21 = vector.load %arg7[%c0_15, %c0_16] : memref<1x3xf32, #tpu.memory_space<vmem>>, vector<1x3xf32>
    %22 = vector.broadcast %21 : vector<1x3xf32> to vector<16x3xf32>
    %23 = arith.addf %20, %22 : vector<16x3xf32>
    %c0_17 = arith.constant 0 : index
    %c0_18 = arith.constant 0 : index
    %24 = vector.load %arg8[%c0_17, %c0_18] : memref<16x3xf32, #tpu.memory_space<vmem>>, vector<16x3xf32>
    tpu.vector_store %arg8[%c0_17, %c0_18], %23 {strides = array<i32>} : memref<16x3xf32, #tpu.memory_space<vmem>>, vector<16x3xf32>,
    return
  }
  func.func @transform_0(%arg0: i32) -> (i32, i32) {
    %c0_i32 = arith.constant 0 : i32
    %c0_i32_0 = arith.constant 0 : i32
    return %arg0, %c0_i32 : i32, i32
  }
  func.func @transform_1(%arg0: i32) -> (i32, i32) {
    %c0_i32 = arith.constant 0 : i32
    %c0_i32_0 = arith.constant 0 : i32
    %c0_i32_1 = arith.constant 0 : i32
    return %c0_i32, %c0_i32_0 : i32, i32
  }
  func.func @transform_2(%arg0: i32) -> (i32, i32) {
    %c0_i32 = arith.constant 0 : i32
    %c0_i32_0 = arith.constant 0 : i32
    %c0_i32_1 = arith.constant 0 : i32
    return %c0_i32, %c0_i32_0 : i32, i32
  }
  func.func @transform_3(%arg0: i32) -> (i32, i32) {
    %c0_i32 = arith.constant 0 : i32
    %c0_i32_0 = arith.constant 0 : i32
    %c0_i32_1 = arith.constant 0 : i32
    return %c0_i32, %c0_i32_0 : i32, i32
  }
  func.func @transform_4(%arg0: i32) -> (i32, i32) {
    %c0_i32 = arith.constant 0 : i32
    %c0_i32_0 = arith.constant 0 : i32
    %c0_i32_1 = arith.constant 0 : i32
    return %c0_i32, %c0_i32_0 : i32, i32
  }
  func.func @transform_5(%arg0: i32) -> (i32, i32) {
    %c0_i32 = arith.constant 0 : i32
    %c0_i32_0 = arith.constant 0 : i32
    %c0_i32_1 = arith.constant 0 : i32
    return %c0_i32, %c0_i32_0 : i32, i32
  }
  func.func @transform_6(%arg0: i32) -> (i32, i32) {
    %c0_i32 = arith.constant 0 : i32
    %c0_i32_0 = arith.constant 0 : i32
    %c0_i32_1 = arith.constant 0 : i32
    return %c0_i32, %c0_i32_0 : i32, i32
  }
  func.func @transform_7(%arg0: i32) -> (i32, i32) {
    %c0_i32 = arith.constant 0 : i32
    %c0_i32_0 = arith.constant 0 : i32
    return %arg0, %c0_i32 : i32, i32
  }
}

</mosaic_0001>

<llo_original>
// kernel: dqn_forward.1
$region0: #{dqn_forward.1}
  #allocation0 [shape = 'u32[]', space=smem, size = 0x4, offset = 0x4, fixed_abs, tag = 'smem constant byte address 0x4 - core index']
  #allocation1 [shape = 'u32[144,128]{1,0:T(1,128)}', space=vmem, size = 0x12000, scoped, tag = 'internal scratch']
  %s0 = inlined_call_operand.hbm [shape: f32[8,8], index: 0, kind: input, shape index: {}]
  %s1 = inlined_call_operand.hbm [shape: bf16[8,128], index: 1, kind: input, shape index: {}]
  %s2 = inlined_call_operand.vmem [shape: f32[1,128], index: 2, kind: input, shape index: {}]
  %s3 = inlined_call_operand.hbm [shape: bf16[128,128], index: 3, kind: input, shape index: {}]
  %s4 = inlined_call_operand.vmem [shape: f32[1,128], index: 4, kind: input, shape index: {}]
  %s5 = inlined_call_operand.hbm [shape: bf16[128,128], index: 5, kind: input, shape index: {}]
  %s6 = inlined_call_operand.vmem [shape: f32[1,3], index: 6, kind: input, shape index: {}]
  %s7 = inlined_call_operand.vmem [shape: f32[8,3], index: 7, kind: output, shape index: {}]
  %s8 = sld [smem:[#allocation0]]
  $region88: #{dqn_forward.1} parent=0
    _
  %s10 = ssub.s32 1, %s8
  %s11 = scalar_select 0, %s10, %s8
  $region1: #{dqn_forward.1} parent=0
    #allocation2 [shape = 'u8[8192]{0}', space=vmem, size = 0x2000, scoped, tag = 'input window, operand 0, single buffered']
    #allocation3 [shape = 's32[1]{0}', space=sflag, size = 0x4, scoped, tag = 'scoped memory for dqn_forward.1']
    #allocation4 [shape = 'u8[2048]{0}', space=vmem, size = 0x800, scoped, tag = 'input window, operand 1, single buffered']
    #allocation5 [shape = 's32[1]{0}', space=sflag, size = 0x4, scoped, tag = 'scoped memory for dqn_forward.1']
    #allocation6 [shape = 'u8[32768]{0}', space=vmem, size = 0x8000, scoped, tag = 'input window, operand 3, single buffered']
    #allocation7 [shape = 'u8[32768]{0}', space=vmem, size = 0x8000, scoped, tag = 'input window, operand 5, single buffered']
    #allocation8 [shape = 's32[1]{0}', space=sflag, size = 0x4, scoped, tag = 'scoped memory for dqn_forward.1']
    #allocation9 [shape = 'u8[8192]{0}', space=vmem, size = 0x2000, scoped, tag = 'output window, operand 0, single buffered']
    %12 = vsyncpa [#allocation3], 0
    %13 = vsyncpa [#allocation5], 0
    %14 = vsyncpa [#allocation8], 0
    // Predicated region
    $region2: #{dqn_forward.1} parent=1 // pred_check
      _
    $region3: #{dqn_forward.1} parent=1 // pred_check_branch
      %16 = sbr.rel (0) target = $region5
    $region4: #{dqn_forward.1} parent=1 // pred_region
      %s18 = ssub.s32 256, 128
      %19 = vsyncadd [#allocation3], %s18
      %s20 = sshll.u32 [#allocation2], 4
      %s21 = int_to_ptr.vmem [resolvable:$true] %s20
      %26 = dma.hbm_to_vmem [thread:$0]  %s0, 128, %s21, [#allocation3], 128, 128, 8
    $region5: #{dqn_forward.1} parent=1 // pred_fallthru
      _
    // Predicated region
    $region6: #{dqn_forward.1} parent=1 // pred_check
      _
    $region7: #{dqn_forward.1} parent=1 // pred_check_branch
      %28 = sbr.rel (0) target = $region9
    $region8: #{dqn_forward.1} parent=1 // pred_region
      %s30 = ssub.s32 64, 64
      %31 = vsyncadd [#allocation5], %s30
      %s33 = sshll.u32 [#allocation4], 4
      %s34 = int_to_ptr.vmem [resolvable:$true] %s33
      %36 = dma.hbm_to_vmem [thread:$0]  %s1, 64, %s34, [#allocation5]
    $region9: #{dqn_forward.1} parent=1 // pred_fallthru
      _
    // Predicated region
    $region10: #{dqn_forward.1} parent=1 // pred_check
      _
    $region11: #{dqn_forward.1} parent=1 // pred_check_branch
      %38 = sbr.rel (0) target = $region13
    $region12: #{dqn_forward.1} parent=1 // pred_region
      _
    $region13: #{dqn_forward.1} parent=1 // pred_fallthru
      _
    // Predicated region
    $region14: #{dqn_forward.1} parent=1 // pred_check
      _
    $region15: #{dqn_forward.1} parent=1 // pred_check_branch
      %40 = sbr.rel (0) target = $region17
    $region16: #{dqn_forward.1} parent=1 // pred_region
      %s42 = ssub.s32 1024, 1024
      %43 = vsyncadd [#allocation5], %s42
      %s44 = sshll.u32 [#allocation6], 4
      %s45 = int_to_ptr.vmem [resolvable:$true] %s44
      %50 = dma.hbm_to_vmem [thread:$0]  %s3, 1024, %s45, [#allocation5], 64, 64, 4
    $region17: #{dqn_forward.1} parent=1 // pred_fallthru
      _
    // Predicated region
    $region18: #{dqn_forward.1} parent=1 // pred_check
      _
    $region19: #{dqn_forward.1} parent=1 // pred_check_branch
      %52 = sbr.rel (0) target = $region21
    $region20: #{dqn_forward.1} parent=1 // pred_region
      _
    $region21: #{dqn_forward.1} parent=1 // pred_fallthru
      _
    // Predicated region
    $region22: #{dqn_forward.1} parent=1 // pred_check
      _
    $region23: #{dqn_forward.1} parent=1 // pred_check_branch
      %54 = sbr.rel (0) target = $region25
    $region24: #{dqn_forward.1} parent=1 // pred_region
      %s56 = ssub.s32 1024, 1024
      %57 = vsyncadd [#allocation8], %s56
      %s58 = sshll.u32 [#allocation7], 4
      %s59 = int_to_ptr.vmem [resolvable:$true] %s58
      %64 = dma.hbm_to_vmem [thread:$0]  %s5, 1024, %s59, [#allocation8], 64, 64, 4
    $region25: #{dqn_forward.1} parent=1 // pred_fallthru
      _
    // Predicated region
    $region26: #{dqn_forward.1} parent=1 // pred_check
      _
    $region27: #{dqn_forward.1} parent=1 // pred_check_branch
      %66 = sbr.rel (0) target = $region29
    $region28: #{dqn_forward.1} parent=1 // pred_region
      _
    $region29: #{dqn_forward.1} parent=1 // pred_fallthru
      _
    // Predicated region
    $region30: #{dqn_forward.1} parent=1 // pred_check
      _
    $region31: #{dqn_forward.1} parent=1 // pred_check_branch
      %68 = sbr.rel (0) target = $region33
    $region32: #{dqn_forward.1} parent=1 // pred_region
      %69 = dma.done [#allocation3], 256
    $region33: #{dqn_forward.1} parent=1 // pred_fallthru
      _
    // Predicated region
    $region34: #{dqn_forward.1} parent=1 // pred_check
      _
    $region35: #{dqn_forward.1} parent=1 // pred_check_branch
      %71 = sbr.rel (0) target = $region37
    $region36: #{dqn_forward.1} parent=1 // pred_region
      %72 = dma.done [#allocation5], 64
    $region37: #{dqn_forward.1} parent=1 // pred_fallthru
      _
    // Predicated region
    $region38: #{dqn_forward.1} parent=1 // pred_check
      _
    $region39: #{dqn_forward.1} parent=1 // pred_check_branch
      %74 = sbr.rel (0) target = $region41
    $region40: #{dqn_forward.1} parent=1 // pred_region
      %75 = dma.done [#allocation5], 1024
    $region41: #{dqn_forward.1} parent=1 // pred_fallthru
      _
    // Predicated region
    $region42: #{dqn_forward.1} parent=1 // pred_check
      _
    $region43: #{dqn_forward.1} parent=1 // pred_check_branch
      %77 = sbr.rel (0) target = $region45
    $region44: #{dqn_forward.1} parent=1 // pred_region
      %78 = dma.done [#allocation8], 1024
    $region45: #{dqn_forward.1} parent=1 // pred_fallthru
      _
    %v80 = vld [vmem:[#allocation2] sm:$0xff]
    %v81 = vld [vmem:[#allocation2 + $0x8] sm:$0xff]
    %v82 = vpack.c.bf16 %v81, %v80
    %v83 = vld [vmem:[#allocation4] sm:$0xf]
    %v84 = vld [vmem:[%s2] sm:$0x1]
    %v86 = vlaneseq
    %v87 = vshrl.u32 %v86, 7
    %v88 = vsub.s32 0, %v87
    %v89 = vrot.slane %v84, %v88
    %vm91 = vcmask 64512
    %v93 = vsel %vm91, %v82, 0
    %vm95 = vcmask 1043456
    %v97 = vsel %vm95, %v83, 0
    %99 = vmatprep.subr.bf16.mxu0 0
    %100 = vmatpush1.bf16.msra.mxu0 %v97
    %101 = vmatprep.subr.bf16.mxu0 0
    %102 = vmatpush1.bf16.msra.mxu0 0
    %103 = vmatprep.subr.bf16.mxu0 0
    %104 = vmatpush1.bf16.msra.mxu0 0
    %105 = vmatprep.subr.bf16.mxu0 0
    %106 = vmatpush1.bf16.msra.mxu0 0
    %107 = vmatprep.subr.bf16.mxu0 0
    %108 = vmatpush1.bf16.msra.mxu0 0
    %109 = vmatprep.subr.bf16.mxu0 0
    %110 = vmatpush1.bf16.msra.mxu0 0
    %111 = vmatprep.subr.bf16.mxu0 0
    %112 = vmatpush1.bf16.msra.mxu0 0
    %113 = vmatprep.subr.bf16.mxu0 0
    %114 = vmatpush1.bf16.msra.mxu0 0
    %115 = vmatprep.subr.bf16.mxu0 0
    %116 = vmatpush1.bf16.msra.mxu0 0
    %117 = vmatprep.subr.bf16.mxu0 0
    %118 = vmatpush1.bf16.msra.mxu0 0
    %119 = vmatprep.subr.bf16.mxu0 0
    %120 = vmatpush1.bf16.msra.mxu0 0
    %121 = vmatprep.subr.bf16.mxu0 0
    %122 = vmatpush1.bf16.msra.mxu0 0
    %123 = vmatprep.subr.bf16.mxu0 0
    %124 = vmatpush1.bf16.msra.mxu0 0
    %125 = vmatprep.subr.bf16.mxu0 0
    %126 = vmatpush1.bf16.msra.mxu0 0
    %127 = vmatprep.subr.bf16.mxu0 0
    %128 = vmatpush1.bf16.msra.mxu0 0
    %129 = vmatprep.subr.bf16.mxu0 0
    %130 = vmatpush1.bf16.msra.mxu0 0
    %131 = vmatprep.mubr.bf16.mxu0 0
    %132 = vmatmul.mubr.bf16.gmra.mrb[0].mxu0 %v93
    %v133 = vpop.f32.mrb[0].mxu0
    %v134 = vadd.f32 %v89, %v133
    %v135 = vpop.f32.mrb[0].mxu0
    %v136 = vpop.f32.mrb[0].mxu0
    %v137 = vadd.f32 %v89, %v136
    %v138 = vpop.f32.mrb[0].mxu0
    %139 = vdwg.mxu0
    %v140 = vmax.f32 %v134, 0.0
    %v141 = vmax.f32 %v137, 0.0
    %v142 = vpack.c.bf16 %v141, %v140
    %v143 = vld [vmem:[#allocation6] sm:$0xf]
    %v144 = vld [vmem:[#allocation6 + $0x4] sm:$0xf]
    %v145 = vld [vmem:[#allocation6 + $0x8] sm:$0xf]
    %v146 = vld [vmem:[#allocation6 + $0xc] sm:$0xf]
    %v147 = vld [vmem:[#allocation6 + $0x10] sm:$0xf]
    %v148 = vld [vmem:[#allocation6 + $0x14] sm:$0xf]
    %v149 = vld [vmem:[#allocation6 + $0x18] sm:$0xf]
    %v150 = vld [vmem:[#allocation6 + $0x1c] sm:$0xf]
    %v151 = vld [vmem:[#allocation6 + $0x20] sm:$0xf]
    %v152 = vld [vmem:[#allocation6 + $0x24] sm:$0xf]
    %v153 = vld [vmem:[#allocation6 + $0x28] sm:$0xf]
    %v154 = vld [vmem:[#allocation6 + $0x2c] sm:$0xf]
    %v155 = vld [vmem:[#allocation6 + $0x30] sm:$0xf]
    %v156 = vld [vmem:[#allocation6 + $0x34] sm:$0xf]
    %v157 = vld [vmem:[#allocation6 + $0x38] sm:$0xf]
    %v158 = vld [vmem:[#allocation6 + $0x3c] sm:$0xf]
    %v159 = vld [vmem:[%s4] sm:$0x1]
    %v161 = vlaneseq
    %v162 = vshrl.u32 %v161, 7
    %v163 = vsub.s32 0, %v162
    %v164 = vrot.slane %v159, %v163
    %v182 = vunpack.c.l.b16 %v143
    %v183 = vunpack.c.l.b16 %v144
    %v184 = vunpack.c.l.b16 %v145
    %v185 = vunpack.c.l.b16 %v146
    %v186 = vunpack.c.l.b16 %v147
    %v187 = vunpack.c.l.b16 %v148
    %v188 = vunpack.c.l.b16 %v149
    %v189 = vunpack.c.l.b16 %v150
    %v190 = vunpack.c.l.b16 %v151
    %v191 = vunpack.c.l.b16 %v152
    %v192 = vunpack.c.l.b16 %v153
    %v193 = vunpack.c.l.b16 %v154
    %v194 = vunpack.c.l.b16 %v155
    %v195 = vunpack.c.l.b16 %v156
    %v196 = vunpack.c.l.b16 %v157
    %v197 = vunpack.c.l.b16 %v158
    %v198 = vpack.c.b16 %v183, %v182
    %v199 = vpack.c.b16 %v185, %v184
    %v200 = vpack.c.b16 %v187, %v186
    %v201 = vpack.c.b16 %v189, %v188
    %v202 = vpack.c.b16 %v191, %v190
    %v203 = vpack.c.b16 %v193, %v192
    %v204 = vpack.c.b16 %v195, %v194
    %v205 = vpack.c.b16 %v197, %v196
    %214 = vmatprep.subr.bf16.mxu0 0
    %215 = vmatpush1.bf16.msra.mxu0 %v198
    %216 = vmatprep.subr.bf16.mxu0 0
    %217 = vmatpush1.bf16.msra.mxu0 %v199
    %218 = vmatprep.subr.bf16.mxu0 0
    %219 = vmatpush1.bf16.msra.mxu0 %v200
    %220 = vmatprep.subr.bf16.mxu0 0
    %221 = vmatpush1.bf16.msra.mxu0 %v201
    %222 = vmatprep.subr.bf16.mxu0 0
    %223 = vmatpush1.bf16.msra.mxu0 %v202
    %224 = vmatprep.subr.bf16.mxu0 0
    %225 = vmatpush1.bf16.msra.mxu0 %v203
    %226 = vmatprep.subr.bf16.mxu0 0
    %227 = vmatpush1.bf16.msra.mxu0 %v204
    %228 = vmatprep.subr.bf16.mxu0 0
    %229 = vmatpush1.bf16.msra.mxu0 %v205
    %230 = vmatprep.subr.bf16.mxu0 0
    %231 = vmatpush1.bf16.msra.mxu0 0
    %232 = vmatprep.subr.bf16.mxu0 0
    %233 = vmatpush1.bf16.msra.mxu0 0
    %234 = vmatprep.subr.bf16.mxu0 0
    %235 = vmatpush1.bf16.msra.mxu0 0
    %236 = vmatprep.subr.bf16.mxu0 0
    %237 = vmatpush1.bf16.msra.mxu0 0
    %238 = vmatprep.subr.bf16.mxu0 0
    %239 = vmatpush1.bf16.msra.mxu0 0
    %240 = vmatprep.subr.bf16.mxu0 0
    %241 = vmatpush1.bf16.msra.mxu0 0
    %242 = vmatprep.subr.bf16.mxu0 0
    %243 = vmatpush1.bf16.msra.mxu0 0
    %244 = vmatprep.subr.bf16.mxu0 0
    %245 = vmatpush1.bf16.msra.mxu0 0
    %246 = vmatprep.mubr.bf16.mxu0 0
    %247 = vmatmul.mubr.bf16.gmra.mrb[0].mxu0 %v142
    %v248 = vpop.f32.mrb[0].mxu0
    %v249 = vadd.f32 %v164, %v248
    %v250 = vpop.f32.mrb[0].mxu0
    %v251 = vpop.f32.mrb[0].mxu0
    %v252 = vadd.f32 %v164, %v251
    %v253 = vpop.f32.mrb[0].mxu0
    %254 = vdwg.mxu0
    %v255 = vmax.f32 %v249, 0.0
    %v256 = vmax.f32 %v252, 0.0
    %v257 = vpack.c.bf16 %v256, %v255
    %v258 = vld [vmem:[#allocation7] sm:$0xf]
    %v259 = vld [vmem:[#allocation7 + $0x4] sm:$0xf]
    %v260 = vld [vmem:[#allocation7 + $0x8] sm:$0xf]
    %v261 = vld [vmem:[#allocation7 + $0xc] sm:$0xf]
    %v262 = vld [vmem:[#allocation7 + $0x10] sm:$0xf]
    %v263 = vld [vmem:[#allocation7 + $0x14] sm:$0xf]
    %v264 = vld [vmem:[#allocation7 + $0x18] sm:$0xf]
    %v265 = vld [vmem:[#allocation7 + $0x1c] sm:$0xf]
    %v266 = vld [vmem:[#allocation7 + $0x20] sm:$0xf]
    %v267 = vld [vmem:[#allocation7 + $0x24] sm:$0xf]
    %v268 = vld [vmem:[#allocation7 + $0x28] sm:$0xf]
    %v269 = vld [vmem:[#allocation7 + $0x2c] sm:$0xf]
    %v270 = vld [vmem:[#allocation7 + $0x30] sm:$0xf]
    %v271 = vld [vmem:[#allocation7 + $0x34] sm:$0xf]
    %v272 = vld [vmem:[#allocation7 + $0x38] sm:$0xf]
    %v273 = vld [vmem:[#allocation7 + $0x3c] sm:$0xf]
    %v290 = vunpack.c.l.b16 %v258
    %v291 = vunpack.c.l.b16 %v259
    %v292 = vunpack.c.l.b16 %v260
    %v293 = vunpack.c.l.b16 %v261
    %v294 = vunpack.c.l.b16 %v262
    %v295 = vunpack.c.l.b16 %v263
    %v296 = vunpack.c.l.b16 %v264
    %v297 = vunpack.c.l.b16 %v265
    %v298 = vunpack.c.l.b16 %v266
    %v299 = vunpack.c.l.b16 %v267
    %v300 = vunpack.c.l.b16 %v268
    %v301 = vunpack.c.l.b16 %v269
    %v302 = vunpack.c.l.b16 %v270
    %v303 = vunpack.c.l.b16 %v271
    %v304 = vunpack.c.l.b16 %v272
    %v305 = vunpack.c.l.b16 %v273
    %v306 = vpack.c.b16 %v291, %v290
    %v307 = vpack.c.b16 %v293, %v292
    %v308 = vpack.c.b16 %v295, %v294
    %v309 = vpack.c.b16 %v297, %v296
    %v310 = vpack.c.b16 %v299, %v298
    %v311 = vpack.c.b16 %v301, %v300
    %v312 = vpack.c.b16 %v303, %v302
    %v313 = vpack.c.b16 %v305, %v304
    %322 = vmatprep.subr.bf16.mxu0 0
    %323 = vmatpush1.bf16.msra.mxu0 %v306
    %324 = vmatprep.subr.bf16.mxu0 0
    %325 = vmatpush1.bf16.msra.mxu0 %v307
    %326 = vmatprep.subr.bf16.mxu0 0
    %327 = vmatpush1.bf16.msra.mxu0 %v308
    %328 = vmatprep.subr.bf16.mxu0 0
    %329 = vmatpush1.bf16.msra.mxu0 %v309
    %330 = vmatprep.subr.bf16.mxu0 0
    %331 = vmatpush1.bf16.msra.mxu0 %v310
    %332 = vmatprep.subr.bf16.mxu0 0
    %333 = vmatpush1.bf16.msra.mxu0 %v311
    %334 = vmatprep.subr.bf16.mxu0 0
    %335 = vmatpush1.bf16.msra.mxu0 %v312
    %336 = vmatprep.subr.bf16.mxu0 0
    %337 = vmatpush1.bf16.msra.mxu0 %v313
    %338 = vmatprep.subr.bf16.mxu0 0
    %339 = vmatpush1.bf16.msra.mxu0 0
    %340 = vmatprep.subr.bf16.mxu0 0
    %341 = vmatpush1.bf16.msra.mxu0 0
    %342 = vmatprep.subr.bf16.mxu0 0
    %343 = vmatpush1.bf16.msra.mxu0 0
    %344 = vmatprep.subr.bf16.mxu0 0
    %345 = vmatpush1.bf16.msra.mxu0 0
    %346 = vmatprep.subr.bf16.mxu0 0
    %347 = vmatpush1.bf16.msra.mxu0 0
    %348 = vmatprep.subr.bf16.mxu0 0
    %349 = vmatpush1.bf16.msra.mxu0 0
    %350 = vmatprep.subr.bf16.mxu0 0
    %351 = vmatpush1.bf16.msra.mxu0 0
    %352 = vmatprep.subr.bf16.mxu0 0
    %353 = vmatpush1.bf16.msra.mxu0 0
    %354 = vmatprep.mubr.bf16.mxu0 0
    %355 = vmatmul.mubr.bf16.gmra.mrb[0].mxu0 %v257
    %v356 = vpop.f32.mrb[0].mxu0
    %v357 = vadd.f32 0.0, %v356
    %v358 = vpop.f32.mrb[0].mxu0
    %v359 = vpop.f32.mrb[0].mxu0
    %v360 = vadd.f32 0.0, %v359
    %v361 = vpop.f32.mrb[0].mxu0
    %362 = vdwg.mxu0
    %v363 = vld [vmem:[%s6] sm:$0x1]
    %v365 = vlaneseq
    %v366 = vshrl.u32 %v365, 7
    %v367 = vsub.s32 0, %v366
    %v368 = vrot.slane %v363, %v367
    %v370 = vadd.f32 %v357, %v368
    %v371 = vadd.f32 %v360, %v368
    %vm372 = vcmask 23552
    %373 = vst.msk [vmem:[#allocation9] sm:$0xff] %vm372, %v370
    %374 = vst.msk [vmem:[#allocation9 + $0x8] sm:$0xff] %vm372, %v371
    // Predicated region
    $region46: #{dqn_forward.1} parent=1 // pred_check
      _
    $region47: #{dqn_forward.1} parent=1 // pred_check_branch
      %376 = sbr.rel (0) target = $region49
    $region48: #{dqn_forward.1} parent=1 // pred_region
      // Predicated region
      $region50: #{dqn_forward.1} parent=48 // pred_check
        _
      $region51: #{dqn_forward.1} parent=48 // pred_check_branch
        %378 = sbr.rel (0) target = $region53
      $region52: #{dqn_forward.1} parent=48 // pred_region
        // Predicated region
        $region54: #{dqn_forward.1} parent=52 // pred_check
          _
        $region55: #{dqn_forward.1} parent=52 // pred_check_branch
          %380 = sbr.rel (0) target = $region57
        $region56: #{dqn_forward.1} parent=52 // pred_region
          // Predicated region
          $region69: #{dqn_forward.1} parent=56 // pred_check
            _
          $region70: #{dqn_forward.1} parent=56 // pred_check_branch
            %395 = sbr.rel (0) target = $region72
          $region71: #{dqn_forward.1} parent=56 // pred_region
            loop: start=0, step=1, limit=1
            $region73: #{dqn_forward.1} parent=71 // loop_pre_header
              _
            $region74: #{dqn_forward.1} parent=71 // loop_header
              %s397 = sphi 0, %s401
              %p398 = scmp.ge.s32.totalorder %s397, 1
              %s402 = sphi [#allocation9], [#allocation9]
              %s403 = sphi %s7, %s7
            $region75: #{dqn_forward.1} parent=71 // loop_header_branch
              %400 = sbr.rel (%p398) target = $region79
            $region76: #{dqn_forward.1} parent=71 // loop_body
              %v404 = vld [vmem:[%s402] sm:$0xff]
              %405 = vst [vmem:[%s403] sm:$0xff] %v404
            $region77: #{dqn_forward.1} parent=71 // loop_footer
              %s401 = sadd.s32 1, %s397
            $region78: #{dqn_forward.1} parent=71 // loop_footer_branch
              %396 = sbr.rel target = $region74
            $region79: #{dqn_forward.1} parent=71 // loop_exit
              _
          $region72: #{dqn_forward.1} parent=56 // pred_fallthru
            _
          // Predicated region
          $region80: #{dqn_forward.1} parent=56 // pred_check
            _
          $region81: #{dqn_forward.1} parent=56 // pred_check_branch
            %407 = sbr.rel target = $region83
          $region82: #{dqn_forward.1} parent=56 // pred_region
            _
          $region83: #{dqn_forward.1} parent=56 // pred_fallthru
            _
        $region57: #{dqn_forward.1} parent=52 // pred_fallthru
          _
        // Predicated region
        $region58: #{dqn_forward.1} parent=52 // pred_check
          _
        $region59: #{dqn_forward.1} parent=52 // pred_check_branch
          %382 = sbr.rel target = $region61
        $region60: #{dqn_forward.1} parent=52 // pred_region
          loop: start=0, step=1, limit=1
          $region62: #{dqn_forward.1} parent=60 // loop_pre_header
            _
          $region63: #{dqn_forward.1} parent=60 // loop_header
            %s385 = sphi 0, %s389
            %p386 = scmp.ge.s32.totalorder %s385, 1
            %s390 = sphi [#allocation9], [#allocation9]
            %s391 = sphi %s7, %s7
          $region64: #{dqn_forward.1} parent=60 // loop_header_branch
            %388 = sbr.rel (%p386) target = $region68
          $region65: #{dqn_forward.1} parent=60 // loop_body
            %v392 = vld [vmem:[%s390] sm:$0xff]
            %393 = vst [vmem:[%s391] sm:$0xff] %v392
          $region66: #{dqn_forward.1} parent=60 // loop_footer
            %s389 = sadd.s32 1, %s385
          $region67: #{dqn_forward.1} parent=60 // loop_footer_branch
            %384 = sbr.rel target = $region63
          $region68: #{dqn_forward.1} parent=60 // loop_exit
            _
        $region61: #{dqn_forward.1} parent=52 // pred_fallthru
          _
      $region53: #{dqn_forward.1} parent=48 // pred_fallthru
        _
      %408 = vnop
    $region49: #{dqn_forward.1} parent=1 // pred_fallthru
      _
    // Predicated region
    $region84: #{dqn_forward.1} parent=1 // pred_check
      _
    $region85: #{dqn_forward.1} parent=1 // pred_check_branch
      %410 = sbr.rel (0) target = $region87
    $region86: #{dqn_forward.1} parent=1 // pred_region
      _
    $region87: #{dqn_forward.1} parent=1 // pred_fallthru
      _
    %411 = vsyncpa [#allocation3], 1
    %412 = vsyncpa [#allocation5], 1
    %413 = vsyncpa [#allocation8], 1

</llo_original>
